<compile_context>
chip_gen: v5e
topology: v5e:2x2
jax: 0.10.0
libtpu: 0.0.40
codegen_flags: <defaults>
</compile_context>

<pallas_src>
import functools

import jax
import jax.numpy as jnp
from jax.experimental import pallas as pl
from jax.experimental.pallas import tpu as pltpu


def _round_up(x: int, m: int) -> int:
    return ((x + m - 1) // m) * m


def _generator_kernel(z_ref, w_ref, b_ref, o_ref):
    # z_ref: (Np, z_dim)  bf16 — resident (same block for every grid step)
    # w_ref: (z_dim, TN)  bf16 — streamed over the HW axis (double-buffered)
    # b_ref: (1, TN)      f32
    # o_ref: (Np, TN)     f32
    acc = jnp.dot(z_ref[...], w_ref[...],
                  preferred_element_type=jnp.float32)      # MXU, f32 accumulate
    o_ref[...] = jnp.tanh(acc + b_ref[...])                # f32 VPU/EUP epilogue


@functools.partial(jax.jit, static_argnames=("img_height", "img_width", "tn"))
def gan_forward(z, w, b, *, img_height, img_width, tn=2048):
    """Pallas forward: z (N, z_dim) -> images (N, img_height, img_width)."""
    n, z_dim = z.shape
    hw = img_height * img_width
    assert w.shape == (z_dim, hw)
    assert b.shape == (1, hw)

    # Lane-dense output tiles (multiple of 128, never below 128); pad HW so the
    # grid divides evenly. Pad N to the bf16 sublane multiple (16).
    tn = min(tn, _round_up(hw, 128))
    hw_pad = _round_up(hw, tn)
    n_pad = _round_up(max(n, 16), 16)
    grid = (hw_pad // tn,)

    z_bf = jnp.zeros((n_pad, z_dim), jnp.bfloat16).at[:n].set(
        z.astype(jnp.bfloat16))
    w_bf = jnp.zeros((z_dim, hw_pad), jnp.bfloat16).at[:, :hw].set(
        w.astype(jnp.bfloat16))
    b_f32 = jnp.zeros((1, hw_pad), jnp.float32).at[:, :hw].set(
        b.astype(jnp.float32))

    out_flat = pl.pallas_call(
        _generator_kernel,
        out_shape=jax.ShapeDtypeStruct((n_pad, hw_pad), jnp.float32),
        grid=grid,
        in_specs=[
            pl.BlockSpec((n_pad, z_dim), lambda j: (0, 0)),   # z: resident block
            pl.BlockSpec((z_dim, tn), lambda j: (0, j)),      # W: stream columns
            pl.BlockSpec((1, tn), lambda j: (0, j)),          # bias: stream
        ],
        out_specs=pl.BlockSpec((n_pad, tn), lambda j: (0, j)),
        compiler_params=pltpu.CompilerParams(
            dimension_semantics=("parallel",),   # shard HW tiles across TCs (v7x)
            vmem_limit_bytes=32 * 1024 * 1024,   # safe on v7x's 64 MiB VMEM too
        ),
    )(z_bf, w_bf, b_f32)

    return out_flat[:n, :hw].reshape(n, img_height, img_width)


def sample_latent(batch_size, z_dim, seed=None):
    """Mirror of BaseGAN.sample_latent: batch of latent vectors (N, z_dim)."""
    key = jax.random.PRNGKey(0 if seed is None else seed)
    return jax.random.normal(key, (batch_size, z_dim), dtype=jnp.float32)


def init_params(z_dim, img_height, img_width):
    """Deterministic synthetic parameter init (no checkpoint loading)."""
    hw = img_height * img_width
    kw, kb = jax.random.split(jax.random.PRNGKey(0))
    w = (jax.random.normal(kw, (z_dim, hw), dtype=jnp.float32)
         / jnp.sqrt(jnp.float32(z_dim)))
    b = 0.01 * jax.random.normal(kb, (1, hw), dtype=jnp.float32)
    return w, b


if __name__ == "__main__":
    N, Z_DIM, H, W = 2, 32, 16, 16

    # Deterministic example latent batch (uses PRNGKey(0) via seed=None).
    z = sample_latent(N, Z_DIM, seed=None)
    w, b = init_params(Z_DIM, H, W)

    imgs = gan_forward(z, w, b, img_height=H, img_width=W)
    jax.block_until_ready(imgs)

    # Cross-check against plain-JAX reference using the same bf16-rounded inputs.
    z_r = z.astype(jnp.bfloat16).astype(jnp.float32)
    w_r = w.astype(jnp.bfloat16).astype(jnp.float32)
    ref = jnp.tanh(z_r @ w_r + b).reshape(N, H, W)
    assert imgs.shape == (N, H, W)
    assert jnp.allclose(imgs, ref, atol=1e-3, rtol=1e-3)

    # TODO(synk): `forward` / `sample_latent` are abstract in BaseGAN; this is the
    # minimal concrete generator consistent with the documented interface.
    print("KERNEL_OK")
</pallas_src>

<mosaic_0001>
module attributes {stable_mosaic.version = 11 : i64} {
  func.func @_generator_kernel(%arg0: i32, %arg1: memref<16x32xbf16, #tpu.memory_space<vmem>>, %arg2: memref<32x256xbf16, #tpu.memory_space<vmem>>, %arg3: memref<1x256xf32, #tpu.memory_space<vmem>>, %arg4: memref<16x256xf32, #tpu.memory_space<vmem>>) attributes {dimension_semantics = [#tpu.dimension_semantics<parallel>], iteration_bounds = array<i64: 1>, scalar_prefetch = 0 : i64, scratch_operands = 0 : i64, tpu.core_type = #tpu.core_type<tc>, window_params = [{pipeline_mode = #tpu.pipeline_mode<synchronous>, transform_indices = @transform_0, window_bounds = array<i64: 16, 32>}, {transform_indices = @transform_1, window_bounds = array<i64: 32, 256>}, {transform_indices = @transform_2, window_bounds = array<i64: 1, 256>}, {transform_indices = @transform_3, window_bounds = array<i64: 16, 256>}]} {
    %c0 = arith.constant 0 : index
    %c0_0 = arith.constant 0 : index
    %0 = vector.load %arg1[%c0, %c0_0] : memref<16x32xbf16, #tpu.memory_space<vmem>>, vector<16x32xbf16>
    %c0_1 = arith.constant 0 : index
    %c0_2 = arith.constant 0 : index
    %1 = vector.load %arg2[%c0_1, %c0_2] : memref<32x256xbf16, #tpu.memory_space<vmem>>, vector<32x256xbf16>
    %cst = arith.constant dense<0.000000e+00> : vector<16x256xf32>
    %2 = tpu.matmul %0, %1, %cst {dimension_numbers = #tpu.dot_dimension_numbers<[1], [0], [0], [1], [0, 0, 1, 1], [], []>} : vector<16x32xbf16>, vector<32x256xbf16>, vector<16x256xf32> -> vector<16x256xf32>
    %c0_3 = arith.constant 0 : index
    %c0_4 = arith.constant 0 : index
    %3 = vector.load %arg3[%c0_3, %c0_4] : memref<1x256xf32, #tpu.memory_space<vmem>>, vector<1x256xf32>
    %4 = vector.broadcast %3 : vector<1x256xf32> to vector<16x256xf32>
    %5 = arith.addf %2, %4 : vector<16x256xf32>
    %6 = math.tanh %5 : vector<16x256xf32>
    %c0_5 = arith.constant 0 : index
    %c0_6 = arith.constant 0 : index
    %7 = vector.load %arg4[%c0_5, %c0_6] : memref<16x256xf32, #tpu.memory_space<vmem>>, vector<16x256xf32>
    tpu.vector_store %arg4[%c0_5, %c0_6], %6 {strides = array<i32>} : memref<16x256xf32, #tpu.memory_space<vmem>>, vector<16x256xf32>,
    return
  }
  func.func @transform_0(%arg0: i32) -> (i32, i32) {
    %c0_i32 = arith.constant 0 : i32
    %c0_i32_0 = arith.constant 0 : i32
    %c0_i32_1 = arith.constant 0 : i32
    return %c0_i32, %c0_i32_0 : i32, i32
  }
  func.func @transform_1(%arg0: i32) -> (i32, i32) {
    %c0_i32 = arith.constant 0 : i32
    %c0_i32_0 = arith.constant 0 : i32
    return %c0_i32, %arg0 : i32, i32
  }
  func.func @transform_2(%arg0: i32) -> (i32, i32) {
    %c0_i32 = arith.constant 0 : i32
    %c0_i32_0 = arith.constant 0 : i32
    return %c0_i32, %arg0 : i32, i32
  }
  func.func @transform_3(%arg0: i32) -> (i32, i32) {
    %c0_i32 = arith.constant 0 : i32
    %c0_i32_0 = arith.constant 0 : i32
    return %c0_i32, %arg0 : i32, i32
  }
}

</mosaic_0001>

<llo_original>
// kernel: gan_forward.1
$region0: #{gan_forward.1}
  #allocation0 [shape = 'u32[]', space=smem, size = 0x4, offset = 0x4, fixed_abs, tag = 'smem constant byte address 0x4 - core index']
  #allocation1 [shape = 'u32[72,128]{1,0:T(1,128)}', space=vmem, size = 0x9000, scoped, tag = 'internal scratch']
  %s0 = inlined_call_operand.vmem [shape: bf16[16,32], index: 0, kind: input, shape index: {}]
  %s1 = inlined_call_operand.vmem [shape: bf16[32,256], index: 1, kind: input, shape index: {}]
  %s2 = inlined_call_operand.vmem [shape: f32[1,256], index: 2, kind: input, shape index: {}]
  %s3 = inlined_call_operand.vmem [shape: f32[16,256], index: 3, kind: output, shape index: {}]
  %s4 = sld [smem:[#allocation0]]
  $region22: #{gan_forward.1} parent=0
    _
  %s6 = ssub.s32 1, %s4
  %s7 = scalar_select 0, %s6, %s4
  // Predicated region
  $region2: #{gan_forward.1} parent=0 // pred_check
    _
  $region3: #{gan_forward.1} parent=0 // pred_check_branch
    %9 = sbr.rel (0) target = $region5
  $region4: #{gan_forward.1} parent=0 // pred_region
    _
  $region5: #{gan_forward.1} parent=0 // pred_fallthru
    _
  // Predicated region
  $region6: #{gan_forward.1} parent=0 // pred_check
    _
  $region7: #{gan_forward.1} parent=0 // pred_check_branch
    %11 = sbr.rel (0) target = $region9
  $region8: #{gan_forward.1} parent=0 // pred_region
    _
  $region9: #{gan_forward.1} parent=0 // pred_fallthru
    _
  // Predicated region
  $region10: #{gan_forward.1} parent=0 // pred_check
    _
  $region11: #{gan_forward.1} parent=0 // pred_check_branch
    %13 = sbr.rel (0) target = $region13
  $region12: #{gan_forward.1} parent=0 // pred_region
    _
  $region13: #{gan_forward.1} parent=0 // pred_fallthru
    _
  %v15 = vld [vmem:[%s0] sm:$0xf]
  %v16 = vld [vmem:[%s0 + $0x4] sm:$0xf]
  %v17 = vld [vmem:[%s1] sm:$0xff]
  %v18 = vld [vmem:[%s1 + $0x8] sm:$0xff]
  %v19 = vld [vmem:[%s1 + $0x10] sm:$0xff]
  %v20 = vld [vmem:[%s1 + $0x18] sm:$0xff]
  %v21 = vld [vmem:[%s2] sm:$0x3]
  %v23 = vperm.slane %v21, 0
  %v24 = vperm.slane %v21, 1
  %v29 = vunpack.c.l.b16 %v15
  %v30 = vunpack.c.l.b16 %v16
  %v31 = vpack.c.b16 %v30, %v29
  %v36 = vunpack.c.l.b16 %v17
  %v37 = vunpack.c.h.b16 %v17
  %v38 = vunpack.c.l.b16 %v18
  %v39 = vunpack.c.h.b16 %v18
  %v40 = vunpack.c.l.b16 %v19
  %v41 = vunpack.c.h.b16 %v19
  %v42 = vunpack.c.l.b16 %v20
  %v43 = vunpack.c.h.b16 %v20
  %v44 = vpack.c.b16 %v38, %v36
  %v45 = vpack.c.b16 %v39, %v37
  %v46 = vpack.c.b16 %v42, %v40
  %v47 = vpack.c.b16 %v43, %v41
  %vm52 = vcmask 261120
  %v54 = vsel %vm52, %v31, 0
  %56 = vmatpush.bf16.msra.mxu0 0
  %57 = vmatpush.bf16.msra.mxu0 0
  %58 = vmatpush.bf16.msra.mxu0 0
  %59 = vmatpush.bf16.msra.mxu0 0
  %60 = vmatpush.bf16.msra.mxu0 0
  %61 = vmatpush.bf16.msra.mxu0 0
  %62 = vmatpush.bf16.msra.mxu0 %v46
  %63 = vmatpush.bf16.msra.mxu0 %v44
  %64 = vmatmul.bf16.gmra.mxu0 %v54
  %v65 = vpop.f32.mrf.mxu0
  %v66 = vadd.f32 %v23, %v65
  %v67 = vpop.f32.mrf.mxu0
  %v68 = vadd.f32 %v23, %v67
  %69 = vdwg.mxu0
  %70 = vmatpush.bf16.msra.mxu0 0
  %71 = vmatpush.bf16.msra.mxu0 0
  %72 = vmatpush.bf16.msra.mxu0 0
  %73 = vmatpush.bf16.msra.mxu0 0
  %74 = vmatpush.bf16.msra.mxu0 0
  %75 = vmatpush.bf16.msra.mxu0 0
  %76 = vmatpush.bf16.msra.mxu0 %v47
  %77 = vmatpush.bf16.msra.mxu0 %v45
  %78 = vmatmul.bf16.gmra.mxu0 %v54
  %v79 = vpop.f32.mrf.mxu0
  %v80 = vadd.f32 %v24, %v79
  %v81 = vpop.f32.mrf.mxu0
  %v82 = vadd.f32 %v24, %v81
  %83 = vdwg.mxu0
  %v84 = vtanh.pop %v66
  %v85 = vtanh.pop %v80
  %v86 = vtanh.pop %v68
  %v87 = vtanh.pop %v82
  %88 = vst [vmem:[%s3] sm:$0xff] %v84
  %89 = vst [vmem:[%s3 + $0x8] sm:$0xff] %v85
  %90 = vst [vmem:[%s3 + $0x10] sm:$0xff] %v86
  %91 = vst [vmem:[%s3 + $0x18] sm:$0xff] %v87
  // Predicated region
  $region14: #{gan_forward.1} parent=0 // pred_check
    _
  $region15: #{gan_forward.1} parent=0 // pred_check_branch
    %93 = sbr.rel (0) target = $region17
  $region16: #{gan_forward.1} parent=0 // pred_region
    _
  $region17: #{gan_forward.1} parent=0 // pred_fallthru
    _
  // Predicated region
  $region18: #{gan_forward.1} parent=0 // pred_check
    _
  $region19: #{gan_forward.1} parent=0 // pred_check_branch
    %95 = sbr.rel (0) target = $region21
  $region20: #{gan_forward.1} parent=0 // pred_region
    _
  $region21: #{gan_forward.1} parent=0 // pred_fallthru
    _

</llo_original>
